<compile_context>
chip_gen: v7x
topology: tpu7x:2x2x1
jax: 0.10.0
libtpu: 0.0.40
codegen_flags: <defaults>
</compile_context>

<pallas_src>
import math

import jax
import jax.numpy as jnp
import numpy as np
from jax.experimental import pallas as pl
from jax.experimental.pallas import tpu as pltpu


_SUBLANE = {4: 8, 2: 16, 1: 32}   # dtype-aware sublane packing (f32 / bf16 / int8)
_LANE = 128


def _vmem_capacity_bytes():
    """Generation-aware VMEM capacity (64 MiB on v7x, 128 MiB on v5e/v6e)."""
    try:
        cap = getattr(pltpu.get_tpu_info(), "vmem_capacity_bytes", None)
        if cap:
            return int(cap)
    except Exception:
        pass
    return 64 * 1024 * 1024        # conservative default (v7x per-TC VMEM)


# ----------------------------- kernel bodies ---------------------------------

def _make_col_tiled_kernel(starts, ntiles):
    """At grid step (i, j) exactly one input owns output column tile j."""

    def kernel(*refs):
        *in_refs, o_ref = refs
        j = pl.program_id(1)
        for r, s, nt in zip(in_refs, starts, ntiles):
            @pl.when((j >= s) & (j < s + nt))
            def _copy(r=r):
                o_ref[...] = r[...]

    return kernel


def _make_slab_kernel(widths):
    """Fallback: copy each input's full-width slab into its static column range."""
    offs = [int(o) for o in np.cumsum([0] + list(widths[:-1]))]

    def kernel(*refs):
        *in_refs, o_ref = refs
        for r, off, w in zip(in_refs, offs, widths):
            # TODO(synk): non-128-aligned widths lower to masked vst on this path;
            # a pure HBM->HBM DMA variant would avoid that but is not needed for
            # correctness.
            o_ref[:, off:off + w] = r[...]

    return kernel


# ----------------------------- tile selection ---------------------------------

def _row_tile(outer, sub, cap_rows=512):
    if outer <= sub:
        return outer                               # full dim (always legal)
    return max(sub, min(cap_rows, (outer // sub) * sub))


def _col_tile(widths, tm, itemsize, budget_bytes):
    """Largest 128-multiple dividing every width (so column tiles never straddle
    an input boundary) that keeps double-buffered residency under budget."""
    n = len(widths)
    total = sum(widths)
    g = widths[0]
    for w in widths[1:]:
        g = math.gcd(g, w)
    if g % _LANE != 0:
        return None                                # misaligned -> fallback path
    per_col = 2 * (n + 1) * tm * itemsize          # residency bytes per column elem
    cap = min(g, max(_LANE, budget_bytes // max(per_col, 1)))
    if n >= 2:
        cap = min(cap, max(_LANE, total // 2))     # guarantee >=2 column steps
    m = g // _LANE
    d = max(1, min(m, cap // _LANE))
    while d > 1 and m % d != 0:
        d -= 1
    return _LANE * d


# --------------------------------- wrapper ------------------------------------

def concat_pallas(xs, dim=1):
    """Pallas equivalent of torch.cat(xs, dim) for same-dtype tensors."""
    xs = [jnp.asarray(x) for x in xs]
    assert len(xs) >= 1, "torch.cat needs at least one tensor"
    nd = xs[0].ndim
    d = dim % nd
    dtype = xs[0].dtype
    for x in xs:
        assert x.dtype == dtype, "torch.cat requires matching dtypes"
        assert x.ndim == nd
        for ax in range(nd):
            if ax != d:
                assert x.shape[ax] == xs[0].shape[ax], "non-concat dims must match"

    out_shape = list(xs[0].shape)
    out_shape[d] = sum(int(x.shape[d]) for x in xs)
    out_shape = tuple(out_shape)

    outer = int(np.prod(xs[0].shape[:d], dtype=np.int64)) if d > 0 else 1
    inner = int(np.prod(xs[0].shape[d + 1:], dtype=np.int64)) if d < nd - 1 else 1

    # torch.cat permits size-0 tensors along the concat dim: drop them.
    xs = [x for x in xs if int(x.shape[d]) > 0]
    if not xs or outer == 0 or inner == 0 or out_shape[d] == 0:
        return jnp.zeros(out_shape, dtype)

    widths = [int(x.shape[d]) * inner for x in xs]
    total = int(sum(widths))
    itemsize = jnp.dtype(dtype).itemsize
    sub = _SUBLANE.get(itemsize, 8)

    # Free row-major 2-D views: concat along d == column-slab copies on this view.
    xs2d = [x.reshape(outer, w) for x, w in zip(xs, widths)]

    vmem_cap = _vmem_capacity_bytes()
    budget = vmem_cap // 8                              # double-buffered residency target
    vmem_limit = int(min(vmem_cap // 2, 64 * 1024 * 1024))

    tm = _row_tile(outer, sub)
    tc = _col_tile(widths, tm, itemsize, budget)

    if tc is not None:
        # Belt-and-braces: shrink rows if the floored 128-column tile still overshoots.
        while outer > sub and tm > sub and 2 * (len(widths) + 1) * tm * tc * itemsize > budget:
            tm -= sub

        ntiles = [w // tc for w in widths]
        starts = [int(s) for s in np.cumsum([0] + ntiles[:-1])]
        n_col_tiles = total // tc

        def in_map(start, nt):
            def index_map(i, j):
                jj = jnp.minimum(jnp.maximum(j - start, 0), nt - 1)
                return (i, jj)
            return index_map

        in_specs = [pl.BlockSpec((tm, tc), in_map(s, nt))
                    for s, nt in zip(starts, ntiles)]
        out_specs = pl.BlockSpec((tm, tc), lambda i, j: (i, j))
        grid = (pl.cdiv(outer, tm), n_col_tiles)
        kernel = _make_col_tiled_kernel(starts, ntiles)
        semantics = ("parallel", "parallel")
    else:
        # Fallback: full-width per-input slabs, row tiling only (any widths legal
        # because the last block dim equals the full array dim).
        row_bytes = 2 * 2 * total * itemsize            # double-buffered in + out per row
        if outer <= sub:
            tm_f = outer
        else:
            tm_budget = max(sub, (budget // max(row_bytes, 1)) // sub * sub)
            tm_f = max(sub, min((outer // sub) * sub, tm_budget))

        in_specs = [pl.BlockSpec((tm_f, w), lambda i: (i, 0)) for w in widths]
        out_specs = pl.BlockSpec((tm_f, total), lambda i: (i, 0))
        grid = (pl.cdiv(outer, tm_f),)
        kernel = _make_slab_kernel(widths)
        semantics = ("parallel",)

    out2d = pl.pallas_call(
        kernel,
        out_shape=jax.ShapeDtypeStruct((outer, total), dtype),
        grid_spec=pltpu.PrefetchScalarGridSpec(
            num_scalar_prefetch=0,
            grid=grid,
            in_specs=in_specs,
            out_specs=out_specs,
        ),
        compiler_params=pltpu.CompilerParams(
            dimension_semantics=semantics,
            vmem_limit_bytes=vmem_limit,
        ),
    )(*xs2d)

    return out2d.reshape(out_shape)


# ----------------------------------- main --------------------------------------

if __name__ == "__main__":
    key = jax.random.PRNGKey(0)
    k0, k1, k2 = jax.random.split(key, 3)

    # Default Concat (d=1): channel concat of NCHW feature maps (the common case).
    x0 = jax.random.normal(k0, (2, 4, 16, 16), jnp.float32)
    x1 = jax.random.normal(k1, (2, 4, 16, 16), jnp.float32)
    x2 = jax.random.normal(k2, (2, 8, 16, 16), jnp.float32)

    out = jax.block_until_ready(concat_pallas([x0, x1, x2], dim=1))
    ref = jnp.concatenate([x0, x1, x2], axis=1)
    assert out.shape == (2, 16, 16, 16)
    np.testing.assert_array_equal(np.asarray(out), np.asarray(ref))

    # d=0 (row concat) — column-tiled path with a different 2-D view.
    out0 = jax.block_until_ready(concat_pallas([x0, x1], dim=0))
    np.testing.assert_array_equal(np.asarray(out0),
                                  np.asarray(jnp.concatenate([x0, x1], axis=0)))

    # Last-dim concat (inner=1, widths not 128-aligned) — exercises the fallback path.
    out3 = jax.block_until_ready(concat_pallas([x0, x1], dim=3))
    np.testing.assert_array_equal(np.asarray(out3),
                                  np.asarray(jnp.concatenate([x0, x1], axis=3)))

    print("KERNEL_OK")
</pallas_src>

<mosaic_0001>
module attributes {stable_mosaic.version = 11 : i64} {
  func.func @kernel(%arg0: i32, %arg1: i32, %arg2: memref<2x1024xf32, #tpu.memory_space<vmem>>, %arg3: memref<2x1024xf32, #tpu.memory_space<vmem>>, %arg4: memref<2x1024xf32, #tpu.memory_space<vmem>>, %arg5: memref<2x1024xf32, #tpu.memory_space<vmem>>) attributes {dimension_semantics = [#tpu.dimension_semantics<parallel>, #tpu.dimension_semantics<parallel>], iteration_bounds = array<i64: 1, 4>, scalar_prefetch = 0 : i64, scratch_operands = 0 : i64, tpu.core_type = #tpu.core_type<tc>, window_params = [{transform_indices = @transform_0, window_bounds = array<i64: 2, 1024>}, {transform_indices = @transform_1, window_bounds = array<i64: 2, 1024>}, {transform_indices = @transform_2, window_bounds = array<i64: 2, 1024>}, {transform_indices = @transform_3, window_bounds = array<i64: 2, 1024>}]} {
    %c0_i32 = arith.constant 0 : i32
    %0 = arith.cmpi sge, %arg1, %c0_i32 : i32
    %c1_i32 = arith.constant 1 : i32
    %1 = arith.cmpi slt, %arg1, %c1_i32 : i32
    %2 = arith.andi %0, %1 : i1
    %3 = arith.extui %2 : i1 to i32
    %c0_i32_0 = arith.constant 0 : i32
    %4 = arith.cmpi ne, %3, %c0_i32_0 : i32
    scf.if %4 {
      %c0 = arith.constant 0 : index
      %c0_5 = arith.constant 0 : index
      %15 = vector.load %arg2[%c0, %c0_5] : memref<2x1024xf32, #tpu.memory_space<vmem>>, vector<2x1024xf32>
      %c0_6 = arith.constant 0 : index
      %c0_7 = arith.constant 0 : index
      %16 = vector.load %arg5[%c0_6, %c0_7] : memref<2x1024xf32, #tpu.memory_space<vmem>>, vector<2x1024xf32>
      tpu.vector_store %arg5[%c0_6, %c0_7], %15 {strides = array<i32>} : memref<2x1024xf32, #tpu.memory_space<vmem>>, vector<2x1024xf32>,
    } else {
    }
    %c1_i32_1 = arith.constant 1 : i32
    %5 = arith.cmpi sge, %arg1, %c1_i32_1 : i32
    %c2_i32 = arith.constant 2 : i32
    %6 = arith.cmpi slt, %arg1, %c2_i32 : i32
    %7 = arith.andi %5, %6 : i1
    %8 = arith.extui %7 : i1 to i32
    %c0_i32_2 = arith.constant 0 : i32
    %9 = arith.cmpi ne, %8, %c0_i32_2 : i32
    scf.if %9 {
      %c0 = arith.constant 0 : index
      %c0_5 = arith.constant 0 : index
      %15 = vector.load %arg3[%c0, %c0_5] : memref<2x1024xf32, #tpu.memory_space<vmem>>, vector<2x1024xf32>
      %c0_6 = arith.constant 0 : index
      %c0_7 = arith.constant 0 : index
      %16 = vector.load %arg5[%c0_6, %c0_7] : memref<2x1024xf32, #tpu.memory_space<vmem>>, vector<2x1024xf32>
      tpu.vector_store %arg5[%c0_6, %c0_7], %15 {strides = array<i32>} : memref<2x1024xf32, #tpu.memory_space<vmem>>, vector<2x1024xf32>,
    } else {
    }
    %c2_i32_3 = arith.constant 2 : i32
    %10 = arith.cmpi sge, %arg1, %c2_i32_3 : i32
    %c4_i32 = arith.constant 4 : i32
    %11 = arith.cmpi slt, %arg1, %c4_i32 : i32
    %12 = arith.andi %10, %11 : i1
    %13 = arith.extui %12 : i1 to i32
    %c0_i32_4 = arith.constant 0 : i32
    %14 = arith.cmpi ne, %13, %c0_i32_4 : i32
    scf.if %14 {
      %c0 = arith.constant 0 : index
      %c0_5 = arith.constant 0 : index
      %15 = vector.load %arg4[%c0, %c0_5] : memref<2x1024xf32, #tpu.memory_space<vmem>>, vector<2x1024xf32>
      %c0_6 = arith.constant 0 : index
      %c0_7 = arith.constant 0 : index
      %16 = vector.load %arg5[%c0_6, %c0_7] : memref<2x1024xf32, #tpu.memory_space<vmem>>, vector<2x1024xf32>
      tpu.vector_store %arg5[%c0_6, %c0_7], %15 {strides = array<i32>} : memref<2x1024xf32, #tpu.memory_space<vmem>>, vector<2x1024xf32>,
    } else {
    }
    return
  }
  func.func @transform_0(%arg0: i32, %arg1: i32) -> (i32, i32) {
    %c0_i32 = arith.constant 0 : i32
    %0 = arith.subi %arg1, %c0_i32 : i32
    %c0_i32_0 = arith.constant 0 : i32
    %1 = arith.maxsi %0, %c0_i32_0 : i32
    %c0_i32_1 = arith.constant 0 : i32
    %2 = arith.minsi %1, %c0_i32_1 : i32
    %c0_i32_2 = arith.constant 0 : i32
    return %arg0, %2 : i32, i32
  }
  func.func @transform_1(%arg0: i32, %arg1: i32) -> (i32, i32) {
    %c1_i32 = arith.constant 1 : i32
    %0 = arith.subi %arg1, %c1_i32 : i32
    %c0_i32 = arith.constant 0 : i32
    %1 = arith.maxsi %0, %c0_i32 : i32
    %c0_i32_0 = arith.constant 0 : i32
    %2 = arith.minsi %1, %c0_i32_0 : i32
    %c0_i32_1 = arith.constant 0 : i32
    return %arg0, %2 : i32, i32
  }
  func.func @transform_2(%arg0: i32, %arg1: i32) -> (i32, i32) {
    %c2_i32 = arith.constant 2 : i32
    %0 = arith.subi %arg1, %c2_i32 : i32
    %c0_i32 = arith.constant 0 : i32
    %1 = arith.maxsi %0, %c0_i32 : i32
    %c1_i32 = arith.constant 1 : i32
    %2 = arith.minsi %1, %c1_i32 : i32
    %c0_i32_0 = arith.constant 0 : i32
    return %arg0, %2 : i32, i32
  }
  func.func @transform_3(%arg0: i32, %arg1: i32) -> (i32, i32) {
    %c0_i32 = arith.constant 0 : i32
    return %arg0, %arg1 : i32, i32
  }
}

</mosaic_0001>

<llo_original>
// kernel: tpu_custom_call.1
$region0: #{tpu_custom_call.1}
  #allocation0 [shape = 'u32[]', space=smem, size = 0x4, offset = 0x4, fixed_abs, tag = 'smem constant byte address 0x4 - core index']
  #allocation1 [shape = 'u32[144,128]{1,0:T(1,128)}', space=vmem, size = 0x12000, scoped, tag = 'internal scratch']
  %s0 = inlined_call_operand.hbm [shape: f32[2,1024], index: 0, kind: input, shape index: {}]
  %s1 = inlined_call_operand.hbm [shape: f32[2,1024], index: 1, kind: input, shape index: {}]
  %s2 = inlined_call_operand.hbm [shape: f32[2,2048], index: 2, kind: input, shape index: {}]
  %s3 = inlined_call_operand.hbm [shape: f32[2,4096], index: 3, kind: output, shape index: {}]
  %s4 = sld [smem:[#allocation0]]
  $region69: #{tpu_custom_call.1} parent=0
    _
  %s6 = ssub.s32 1, %s4
  %s7 = scalar_select 0, %s6, %s4
  $region1: #{tpu_custom_call.1} parent=0
    #allocation2 [shape = 'u8[16384]{0}', space=vmem, size = 0x4000, scoped, tag = 'input window, operand 0']
    #allocation3 [shape = 's32[2]{0}', space=sflag, size = 0x8, scoped, tag = 'scoped memory for tpu_custom_call.1']
    #allocation4 [shape = 's32[2]{0}', space=sflag, size = 0x8, scoped, tag = 'scoped memory for tpu_custom_call.1']
    #allocation5 [shape = 'u8[16384]{0}', space=vmem, size = 0x4000, scoped, tag = 'input window, operand 1']
    #allocation6 [shape = 's32[2]{0}', space=sflag, size = 0x8, scoped, tag = 'scoped memory for tpu_custom_call.1']
    #allocation7 [shape = 'u8[16384]{0}', space=vmem, size = 0x4000, scoped, tag = 'input window, operand 2']
    #allocation8 [shape = 'u8[16384]{0}', space=vmem, size = 0x4000, scoped, tag = 'output window, operand 0']
    %8 = vsyncpa [#allocation3], 0
    %s9 = scalar_lea.sflag [#allocation3], 1
    %10 = vsyncpa %s9, 0
    %11 = vsyncpa [#allocation6], 0
    %s12 = scalar_lea.sflag [#allocation6], 1
    %13 = vsyncpa %s12, 0
    %14 = vsyncpa [#allocation4], 0
    %s15 = scalar_lea.sflag [#allocation4], 1
    %16 = vsyncpa %s15, 0
    loop: start=0, step=1, limit=6
    $region2: #{tpu_custom_call.1} parent=1 // loop_pre_header
      _
    $region3: #{tpu_custom_call.1} parent=1 // loop_header
      %s18 = sphi 0, %s22
      %p19 = scmp.ge.s32.totalorder %s18, 6
      %s25 = sphi 0, %s37
      %s26 = sphi 0, %s33
      %s27 = sphi 0, %s25
      %s28 = sphi 0, %s26
      %s29 = sphi 0, %s27
      %s30 = sphi 0, %s28
      %s50 = sphi 0, %s52
      %s53 = sphi 0, %s50
      %s54 = sphi 0, %s53
      %s70 = sphi 0, %s54
      %s88 = sphi 0, %s90
      %s91 = sphi 0, %s88
      %s92 = sphi 0, %s91
      %s108 = sphi 0, %s92
      %s126 = sphi 0, %s128
      %s129 = sphi 0, %s126
      %s130 = sphi 0, %s129
      %s146 = sphi 0, %s130
      %s154 = sphi 0, %s156
      %s157 = sphi 0, %s154
      %s158 = sphi 0, %s157
      %s174 = sphi 0, %s158
    $region4: #{tpu_custom_call.1} parent=1 // loop_header_branch
      %21 = sbr.rel (%p19) target = $region8
    $region5: #{tpu_custom_call.1} parent=1 // loop_body
      %s23 = ssub.s32 %s18, 1
      %s24 = ssub.s32 %s18, 2
      %s31 = sadd.s32 1, %s26
      %p32 = scmp.ge.s32.totalorder %s31, 4
      %s33 = scalar_select %p32, 0, %s31
      %s34 = sadd.s32 1, %s25
      %s35 = scalar_select %p32, %s34, %s25
      %p36 = scmp.ge.s32.totalorder %s35, 1
      %s37 = scalar_select %p36, 0, %s35
      %p38 = scmp.gt.s32.totalorder %s26, 0
      %s39 = scalar_select %p38, %s26, 0
      %p40 = scmp.lt.s32.totalorder %s39, 0
      %s41 = scalar_select %p40, %s39, 0
      %p42 = scmp.gt.s32.totalorder %s33, 0
      %s43 = scalar_select %p42, %s33, 0
      %p44 = scmp.lt.s32.totalorder %s43, 0
      %s45 = scalar_select %p44, %s43, 0
      %s46 = ssub.s32 %s25, %s37
      %s47 = ssub.s32 %s41, %s45
      %s48 = sor.u32 %s46, %s47
      %p49 = scmp.eq.s32.totalorder %s48, 0
      %s51 = sadd.s32 %s50, 1
      %s52 = scalar_select %p49, %s50, %s51
      %p55 = pneg %p49
      %p56 = scmp.eq.s32.totalorder %s18, 3
      %p57 = por %p55, %p56
      %p58 = scmp.ne.s32.totalorder %s50, %s53
      %p59 = scmp.eq.s32.totalorder %s18, 0
      %p60 = por %p58, %p59
      %p61 = scmp.ne.s32.totalorder %s50, %s53
      %p62 = scmp.eq.s32.totalorder %s23, 3
      %p63 = por %p61, %p62
      %p64 = scmp.ne.s32.totalorder %s53, %s54
      %p65 = scmp.eq.s32.totalorder %s23, 0
      %p66 = por %p64, %p65
      %p67 = scmp.ne.s32.totalorder %s53, %s54
      %p68 = scmp.eq.s32.totalorder %s24, 3
      %p69 = por %p67, %p68
      %p71 = scmp.ne.s32.totalorder %s54, %s70
      %p72 = scmp.eq.s32.totalorder %s24, 0
      %p73 = por %p71, %p72
      %s74 = ssub.s32 %s26, 1
      %p75 = scmp.gt.s32.totalorder %s74, 0
      %s76 = scalar_select %p75, %s74, 0
      %p77 = scmp.lt.s32.totalorder %s76, 0
      %s78 = scalar_select %p77, %s76, 0
      %s79 = ssub.s32 %s33, 1
      %p80 = scmp.gt.s32.totalorder %s79, 0
      %s81 = scalar_select %p80, %s79, 0
      %p82 = scmp.lt.s32.totalorder %s81, 0
      %s83 = scalar_select %p82, %s81, 0
      %s84 = ssub.s32 %s25, %s37
      %s85 = ssub.s32 %s78, %s83
      %s86 = sor.u32 %s84, %s85
      %p87 = scmp.eq.s32.totalorder %s86, 0
      %s89 = sadd.s32 %s88, 1
      %s90 = scalar_select %p87, %s88, %s89
      %p93 = pneg %p87
      %p94 = scmp.eq.s32.totalorder %s18, 3
      %p95 = por %p93, %p94
      %p96 = scmp.ne.s32.totalorder %s88, %s91
      %p97 = scmp.eq.s32.totalorder %s18, 0
      %p98 = por %p96, %p97
      %p99 = scmp.ne.s32.totalorder %s88, %s91
      %p100 = scmp.eq.s32.totalorder %s23, 3
      %p101 = por %p99, %p100
      %p102 = scmp.ne.s32.totalorder %s91, %s92
      %p103 = scmp.eq.s32.totalorder %s23, 0
      %p104 = por %p102, %p103
      %p105 = scmp.ne.s32.totalorder %s91, %s92
      %p106 = scmp.eq.s32.totalorder %s24, 3
      %p107 = por %p105, %p106
      %p109 = scmp.ne.s32.totalorder %s92, %s108
      %p110 = scmp.eq.s32.totalorder %s24, 0
      %p111 = por %p109, %p110
      %s112 = ssub.s32 %s26, 2
      %p113 = scmp.gt.s32.totalorder %s112, 0
      %s114 = scalar_select %p113, %s112, 0
      %p115 = scmp.lt.s32.totalorder %s114, 1
      %s116 = scalar_select %p115, %s114, 1
      %s117 = ssub.s32 %s33, 2
      %p118 = scmp.gt.s32.totalorder %s117, 0
      %s119 = scalar_select %p118, %s117, 0
      %p120 = scmp.lt.s32.totalorder %s119, 1
      %s121 = scalar_select %p120, %s119, 1
      %s122 = ssub.s32 %s25, %s37
      %s123 = ssub.s32 %s116, %s121
      %s124 = sor.u32 %s122, %s123
      %p125 = scmp.eq.s32.totalorder %s124, 0
      %s127 = sadd.s32 %s126, 1
      %s128 = scalar_select %p125, %s126, %s127
      %p131 = pneg %p125
      %p132 = scmp.eq.s32.totalorder %s18, 3
      %p133 = por %p131, %p132
      %p134 = scmp.ne.s32.totalorder %s126, %s129
      %p135 = scmp.eq.s32.totalorder %s18, 0
      %p136 = por %p134, %p135
      %p137 = scmp.ne.s32.totalorder %s126, %s129
      %p138 = scmp.eq.s32.totalorder %s23, 3
      %p139 = por %p137, %p138
      %p140 = scmp.ne.s32.totalorder %s129, %s130
      %p141 = scmp.eq.s32.totalorder %s23, 0
      %p142 = por %p140, %p141
      %p143 = scmp.ne.s32.totalorder %s129, %s130
      %p144 = scmp.eq.s32.totalorder %s24, 3
      %p145 = por %p143, %p144
      %p147 = scmp.ne.s32.totalorder %s130, %s146
      %p148 = scmp.eq.s32.totalorder %s24, 0
      %p149 = por %p147, %p148
      %s150 = ssub.s32 %s25, %s37
      %s151 = ssub.s32 %s26, %s33
      %s152 = sor.u32 %s150, %s151
      %p153 = scmp.eq.s32.totalorder %s152, 0
      %s155 = sadd.s32 %s154, 1
      %s156 = scalar_select %p153, %s154, %s155
      %p159 = pneg %p153
      %p160 = scmp.eq.s32.totalorder %s18, 3
      %p161 = por %p159, %p160
      %p162 = scmp.ne.s32.totalorder %s154, %s157
      %p163 = scmp.eq.s32.totalorder %s18, 0
      %p164 = por %p162, %p163
      %p165 = scmp.ne.s32.totalorder %s154, %s157
      %p166 = scmp.eq.s32.totalorder %s23, 3
      %p167 = por %p165, %p166
      %p168 = scmp.ne.s32.totalorder %s157, %s158
      %p169 = scmp.eq.s32.totalorder %s23, 0
      %p170 = por %p168, %p169
      %p171 = scmp.ne.s32.totalorder %s157, %s158
      %p172 = scmp.eq.s32.totalorder %s24, 3
      %p173 = por %p171, %p172
      %p175 = scmp.ne.s32.totalorder %s158, %s174
      %p176 = scmp.eq.s32.totalorder %s24, 0
      %p177 = por %p175, %p176
      %p178 = scmp.le.s32.totalorder 1, %s18
      %p179 = scmp.lt.s32.totalorder %s18, 5
      %p180 = pnand %p178, %p179
      %p181 = pneg %p180
      // Predicated region
      $region9: #{tpu_custom_call.1} parent=5 // pred_check
        _
      $region10: #{tpu_custom_call.1} parent=5 // pred_check_branch
        %183 = sbr.rel (%p180) target = $region12
      $region11: #{tpu_custom_call.1} parent=5 // pred_region
        %s184 = ssub.s32 %s18, 1
      $region12: #{tpu_custom_call.1} parent=5 // pred_fallthru
        _
      %p185 = scmp.lt.s32.totalorder %s18, 4
      // Predicated region
      $region13: #{tpu_custom_call.1} parent=5 // pred_check
        %p186 = pneg %p185
      $region14: #{tpu_custom_call.1} parent=5 // pred_check_branch
        %188 = sbr.rel (%p186) target = $region16
      $region15: #{tpu_custom_call.1} parent=5 // pred_region
        // Predicated region
        $region17: #{tpu_custom_call.1} parent=15 // pred_check
          %p189 = pneg %p60
        $region18: #{tpu_custom_call.1} parent=15 // pred_check_branch
          %191 = sbr.rel (%p189) target = $region20
        $region19: #{tpu_custom_call.1} parent=15 // pred_region
          %s192 = sand.u32 %s50, 1
          %s193 = scalar_lea.sflag [#allocation3], %s192
          %s194 = sand.u32 %s50, 1
          %s195 = smul.addr %s194, 16
          %s196 = scalar_lea.vmem [#allocation2], %s195
          %p197 = scmp.gt.s32.totalorder %s26, 0
          %s198 = scalar_select %p197, %s26, 0
          %p199 = scmp.lt.s32.totalorder %s198, 0
          %s200 = scalar_select %p199, %s198, 0
          %s201 = smul.u32 8, %s200
          %s203 = ssub.s32 256, 256
          %204 = vsyncadd %s193, %s203
          %s205 = smul.addr %s25, 8
          %s206 = sadd.s32 %s201, %s205
          %s207 = smul.addr %s206, 32
          %s208 = scalar_lea.hbm %s0, %s207
          %s210 = sshll.u32 %s196, 4
          %s211 = int_to_ptr.vmem [resolvable:$true] %s210
          %213 = dma.hbm_to_vmem [thread:$0]  %s208, 256, %s211, %s193
        $region20: #{tpu_custom_call.1} parent=15 // pred_fallthru
          _
        // Predicated region
        $region21: #{tpu_custom_call.1} parent=15 // pred_check
          %p214 = pneg %p98
        $region22: #{tpu_custom_call.1} parent=15 // pred_check_branch
          %216 = sbr.rel (%p214) target = $region24
        $region23: #{tpu_custom_call.1} parent=15 // pred_region
          %s217 = sand.u32 %s18, 1
          %s218 = scalar_lea.sflag [#allocation6], %s217
          %s219 = sand.u32 %s88, 1
          %s220 = smul.addr %s219, 16
          %s221 = scalar_lea.vmem [#allocation5], %s220
          %s222 = ssub.s32 %s26, 1
          %p223 = scmp.gt.s32.totalorder %s222, 0
          %s224 = scalar_select %p223, %s222, 0
          %p225 = scmp.lt.s32.totalorder %s224, 0
          %s226 = scalar_select %p225, %s224, 0
          %s227 = smul.u32 8, %s226
          %s229 = ssub.s32 256, 256
          %230 = vsyncadd %s218, %s229
          %s231 = smul.addr %s25, 8
          %s232 = sadd.s32 %s227, %s231
          %s233 = smul.addr %s232, 32
          %s234 = scalar_lea.hbm %s1, %s233
          %s236 = sshll.u32 %s221, 4
          %s237 = int_to_ptr.vmem [resolvable:$true] %s236
          %239 = dma.hbm_to_vmem [thread:$0]  %s234, 256, %s237, %s218
        $region24: #{tpu_custom_call.1} parent=15 // pred_fallthru
          _
        // Predicated region
        $region25: #{tpu_custom_call.1} parent=15 // pred_check
          %p240 = pneg %p136
        $region26: #{tpu_custom_call.1} parent=15 // pred_check_branch
          %242 = sbr.rel (%p240) target = $region28
        $region27: #{tpu_custom_call.1} parent=15 // pred_region
          %s243 = sand.u32 %s18, 1
          %s244 = scalar_lea.sflag [#allocation6], %s243
          %s245 = sand.u32 %s126, 1
          %s246 = smul.addr %s245, 16
          %s247 = scalar_lea.vmem [#allocation7], %s246
          %s248 = ssub.s32 %s26, 2
          %p249 = scmp.gt.s32.totalorder %s248, 0
          %s250 = scalar_select %p249, %s248, 0
          %p251 = scmp.lt.s32.totalorder %s250, 1
          %s252 = scalar_select %p251, %s250, 1
          %s253 = smul.u32 8, %s252
          %s255 = ssub.s32 256, 256
          %256 = vsyncadd %s244, %s255
          %s257 = smul.addr %s25, 16
          %s258 = sadd.s32 %s253, %s257
          %s259 = smul.addr %s258, 32
          %s260 = scalar_lea.hbm %s2, %s259
          %s262 = sshll.u32 %s247, 4
          %s263 = int_to_ptr.vmem [resolvable:$true] %s262
          %265 = dma.hbm_to_vmem [thread:$0]  %s260, 256, %s263, %s244
        $region28: #{tpu_custom_call.1} parent=15 // pred_fallthru
          _
      $region16: #{tpu_custom_call.1} parent=5 // pred_fallthru
        _
      %p266 = scmp.le.s32.totalorder 1, %s18
      %p267 = scmp.lt.s32.totalorder %s18, 5
      %p268 = pnand %p266, %p267
      %p269 = pneg %p268
      // Predicated region
      $region29: #{tpu_custom_call.1} parent=5 // pred_check
        _
      $region30: #{tpu_custom_call.1} parent=5 // pred_check_branch
        %271 = sbr.rel (%p268) target = $region32
      $region31: #{tpu_custom_call.1} parent=5 // pred_region
        %s272 = ssub.s32 %s18, 1
        %s273 = sand.u32 %s53, 1
        %s274 = scalar_lea.sflag [#allocation3], %s273
        %s275 = sand.u32 %s53, 1
        %s276 = smul.addr %s275, 16
        %s277 = scalar_lea.vmem [#allocation2], %s276
        // Predicated region
        $region33: #{tpu_custom_call.1} parent=31 // pred_check
          %p278 = pneg %p66
        $region34: #{tpu_custom_call.1} parent=31 // pred_check_branch
          %280 = sbr.rel (%p278) target = $region36
        $region35: #{tpu_custom_call.1} parent=31 // pred_region
          %281 = dma.done %s274, 256
        $region36: #{tpu_custom_call.1} parent=31 // pred_fallthru
          _
        %s282 = sand.u32 %s23, 1
        %s283 = scalar_lea.sflag [#allocation6], %s282
        %s284 = sand.u32 %s91, 1
        %s285 = smul.addr %s284, 16
        %s286 = scalar_lea.vmem [#allocation5], %s285
        // Predicated region
        $region37: #{tpu_custom_call.1} parent=31 // pred_check
          %p287 = pneg %p104
        $region38: #{tpu_custom_call.1} parent=31 // pred_check_branch
          %289 = sbr.rel (%p287) target = $region40
        $region39: #{tpu_custom_call.1} parent=31 // pred_region
          %290 = dma.done %s283, 256
        $region40: #{tpu_custom_call.1} parent=31 // pred_fallthru
          _
        %s291 = sand.u32 %s23, 1
        %s292 = scalar_lea.sflag [#allocation6], %s291
        %s293 = sand.u32 %s129, 1
        %s294 = smul.addr %s293, 16
        %s295 = scalar_lea.vmem [#allocation7], %s294
        // Predicated region
        $region41: #{tpu_custom_call.1} parent=31 // pred_check
          %p296 = pneg %p142
        $region42: #{tpu_custom_call.1} parent=31 // pred_check_branch
          %298 = sbr.rel (%p296) target = $region44
        $region43: #{tpu_custom_call.1} parent=31 // pred_region
          %299 = dma.done %s292, 256
        $region44: #{tpu_custom_call.1} parent=31 // pred_fallthru
          _
        %s300 = sand.u32 %s53, 1
        %s301 = scalar_lea.sflag [#allocation3], %s300
        %s302 = sand.u32 %s53, 1
        %s303 = smul.addr %s302, 16
        %s304 = scalar_lea.vmem [#allocation2], %s303
        %p305 = pneg %p66
        %p306 = pneg %p63
        %s307 = sand.u32 %s23, 1
        %s308 = scalar_lea.sflag [#allocation6], %s307
        %s309 = sand.u32 %s91, 1
        %s310 = smul.addr %s309, 16
        %s311 = scalar_lea.vmem [#allocation5], %s310
        %p312 = pneg %p104
        %p313 = pneg %p101
        %s314 = sand.u32 %s23, 1
        %s315 = scalar_lea.sflag [#allocation6], %s314
        %s316 = sand.u32 %s129, 1
        %s317 = smul.addr %s316, 16
        %s318 = scalar_lea.vmem [#allocation7], %s317
        %p319 = pneg %p142
        %p320 = pneg %p139
        %p321 = pneg %p170
        %p322 = pneg %p167
        %s323 = sand.u32 %s157, 1
        %s324 = scalar_lea.sflag [#allocation4], %s323
        %s325 = sand.u32 %s157, 1
        %s326 = smul.addr %s325, 16
        %s327 = scalar_lea.vmem [#allocation8], %s326
        %p328 = scmp.gt.s32.totalorder %s28, 0
        %s329 = scalar_select %p328, %s28, 0
        %p330 = scmp.lt.s32.totalorder %s329, 0
        %s331 = scalar_select %p330, %s329, 0
        %s332 = smul.u32 8, %s331
        %s333 = ssub.s32 %s28, 1
        %p334 = scmp.gt.s32.totalorder %s333, 0
        %s335 = scalar_select %p334, %s333, 0
        %p336 = scmp.lt.s32.totalorder %s335, 0
        %s337 = scalar_select %p336, %s335, 0
        %s338 = smul.u32 8, %s337
        %s339 = ssub.s32 %s28, 2
        %p340 = scmp.gt.s32.totalorder %s339, 0
        %s341 = scalar_select %p340, %s339, 0
        %p342 = scmp.lt.s32.totalorder %s341, 1
        %s343 = scalar_select %p342, %s341, 1
        %s344 = smul.u32 8, %s343
        %s345 = smul.u32 8, %s28
        %p346 = scmp.ge.s32.totalorder %s28, 0
        %p347 = scmp.lt.s32.totalorder %s28, 1
        %p348 = pnand %p346, %p347
        %p349 = pneg %p348
        // Predicated region
        $region45: #{tpu_custom_call.1} parent=31 // pred_check
          _
        $region46: #{tpu_custom_call.1} parent=31 // pred_check_branch
          %351 = sbr.rel (%p348) target = $region48
        $region47: #{tpu_custom_call.1} parent=31 // pred_region
          %v352 = vld [vmem:[%s277] sm:$0xff]
          %v353 = vld [vmem:[%s277 + $0x8] sm:$0xff]
          %354 = vst [vmem:[%s327] sm:$0xff] %v352
          %355 = vst [vmem:[%s327 + $0x8] sm:$0xff] %v353
        $region48: #{tpu_custom_call.1} parent=31 // pred_fallthru
          _
        %p356 = scmp.ge.s32.totalorder %s28, 1
        %p357 = scmp.lt.s32.totalorder %s28, 2
        %p358 = pnand %p356, %p357
        %p359 = pneg %p358
        // Predicated region
        $region49: #{tpu_custom_call.1} parent=31 // pred_check
          _
        $region50: #{tpu_custom_call.1} parent=31 // pred_check_branch
          %361 = sbr.rel (%p358) target = $region52
        $region51: #{tpu_custom_call.1} parent=31 // pred_region
          %v362 = vld [vmem:[%s286] sm:$0xff]
          %v363 = vld [vmem:[%s286 + $0x8] sm:$0xff]
          %364 = vst [vmem:[%s327] sm:$0xff] %v362
          %365 = vst [vmem:[%s327 + $0x8] sm:$0xff] %v363
        $region52: #{tpu_custom_call.1} parent=31 // pred_fallthru
          _
        %p366 = scmp.ge.s32.totalorder %s28, 2
        %p367 = scmp.lt.s32.totalorder %s28, 4
        %p368 = pnand %p366, %p367
        %p369 = pneg %p368
        // Predicated region
        $region53: #{tpu_custom_call.1} parent=31 // pred_check
          _
        $region54: #{tpu_custom_call.1} parent=31 // pred_check_branch
          %371 = sbr.rel (%p368) target = $region56
        $region55: #{tpu_custom_call.1} parent=31 // pred_region
          %v372 = vld [vmem:[%s295] sm:$0xff]
          %v373 = vld [vmem:[%s295 + $0x8] sm:$0xff]
          %374 = vst [vmem:[%s327] sm:$0xff] %v372
          %375 = vst [vmem:[%s327 + $0x8] sm:$0xff] %v373
        $region56: #{tpu_custom_call.1} parent=31 // pred_fallthru
          _
        %s376 = sand.u32 %s157, 1
        %s377 = scalar_lea.sflag [#allocation4], %s376
        %s378 = sand.u32 %s157, 1
        %s379 = smul.addr %s378, 16
        %s380 = scalar_lea.vmem [#allocation8], %s379
        // Predicated region
        $region57: #{tpu_custom_call.1} parent=31 // pred_check
          %p381 = pneg %p167
        $region58: #{tpu_custom_call.1} parent=31 // pred_check_branch
          %383 = sbr.rel (%p381) target = $region60
        $region59: #{tpu_custom_call.1} parent=31 // pred_region
          %s384 = smul.u32 8, %s28
          %s386 = ssub.s32 256, 256
          %387 = vsyncadd %s377, %s386
          %s388 = smul.addr %s27, 32
          %s389 = sadd.s32 %s384, %s388
          %s390 = smul.addr %s389, 32
          %s391 = scalar_lea.hbm %s3, %s390
          %s393 = sshll.u32 %s380, 4
          %s394 = int_to_ptr.vmem [resolvable:$true] %s393
          %396 = dma.vmem_to_hbm [thread:$0]  %s394, 256, %s391, %s377
        $region60: #{tpu_custom_call.1} parent=31 // pred_fallthru
          _
      $region32: #{tpu_custom_call.1} parent=5 // pred_fallthru
        _
      %p397 = scmp.le.s32.totalorder 2, %s18
      // Predicated region
      $region61: #{tpu_custom_call.1} parent=5 // pred_check
        %p398 = pneg %p397
      $region62: #{tpu_custom_call.1} parent=5 // pred_check_branch
        %400 = sbr.rel (%p398) target = $region64
      $region63: #{tpu_custom_call.1} parent=5 // pred_region
        %s401 = ssub.s32 %s18, 2
        // Predicated region
        $region65: #{tpu_custom_call.1} parent=63 // pred_check
          %p402 = pneg %p173
        $region66: #{tpu_custom_call.1} parent=63 // pred_check_branch
          %404 = sbr.rel (%p402) target = $region68
        $region67: #{tpu_custom_call.1} parent=63 // pred_region
          %s405 = sand.u32 %s158, 1
          %s406 = scalar_lea.sflag [#allocation4], %s405
          %s407 = sand.u32 %s158, 1
          %s408 = smul.addr %s407, 16
          %s409 = scalar_lea.vmem [#allocation8], %s408
          %410 = dma.done %s406, 256
        $region68: #{tpu_custom_call.1} parent=63 // pred_fallthru
          _
      $region64: #{tpu_custom_call.1} parent=5 // pred_fallthru
        _
    $region6: #{tpu_custom_call.1} parent=1 // loop_footer
      %s22 = sadd.s32 1, %s18
    $region7: #{tpu_custom_call.1} parent=1 // loop_footer_branch
      %17 = sbr.rel target = $region3
    $region8: #{tpu_custom_call.1} parent=1 // loop_exit
      _
    %411 = vsyncpa [#allocation3], 1
    %s412 = scalar_lea.sflag [#allocation3], 1
    %413 = vsyncpa %s412, 1
    %414 = vsyncpa [#allocation6], 1
    %s415 = scalar_lea.sflag [#allocation6], 1
    %416 = vsyncpa %s415, 1
    %417 = vsyncpa [#allocation4], 1
    %s418 = scalar_lea.sflag [#allocation4], 1
    %419 = vsyncpa %s418, 1

</llo_original>
